<compile_context>
chip_gen: v5e
topology: v5e:2x2
jax: 0.10.0
libtpu: 0.0.40
codegen_flags: <defaults>
</compile_context>

<pallas_src>
import jax
import jax.numpy as jnp
from jax.experimental import pallas as pl
from jax.experimental.pallas import tpu as pltpu


# ---------------------------------------------------------------------------
# Kernel
# ---------------------------------------------------------------------------
def _swiglu_kernel(x_ref, wgu_ref, w3_ref, o_ref, acc_ref):
    """One (row-tile, hidden-chunk) step of  out = W3( silu(x@W1) * (x@W2) ).

    x_ref:   (tm, D)       activation row tile (native dtype)
    wgu_ref: (D, 2*th)     [W1 chunk | W2 chunk] columns for this hidden chunk
    w3_ref:  (th, D)       W3 rows for this hidden chunk
    o_ref:   (tm, D)       output row tile
    acc_ref: (tm, D) f32   partial-sum accumulator across hidden chunks
    """
    h = pl.program_id(1)
    n_h = pl.num_programs(1)
    th = w3_ref.shape[0]

    # Fused gate/up projection: one wide MXU matmul with N = 2*th, f32 accumulation.
    gu = jnp.dot(x_ref[...], wgu_ref[...], preferred_element_type=jnp.float32)
    gate = gu[:, :th]
    up = gu[:, th:]
    # silu in f32 (VPU/EUP); drop back to the weight dtype so the down-proj
    # matmul runs native (e.g. bf16 x bf16 -> f32) on the MXU.
    hidden = (gate * jax.nn.sigmoid(gate) * up).astype(w3_ref.dtype)
    partial = jnp.dot(hidden, w3_ref[...], preferred_element_type=jnp.float32)

    # First hidden chunk writes the accumulator (saves the zero-init store +
    # read-modify-write); subsequent chunks accumulate.
    @pl.when(h == 0)
    def _():
        acc_ref[...] = partial

    @pl.when(h > 0)
    def _():
        acc_ref[...] += partial

    @pl.when(h == n_h - 1)
    def _():
        o_ref[...] = acc_ref[...].astype(o_ref.dtype)


# ---------------------------------------------------------------------------
# VMEM budget / hardware helpers
# ---------------------------------------------------------------------------
def _round_up(v, m):
    return ((v + m - 1) // m) * m


def _default_vmem_limit():
    """Scoped-VMEM budget: ~3/4 of physical VMEM, capped at 100 MiB."""
    cap = 64 * 1024 * 1024  # conservative fallback = v7x per-TC VMEM
    try:
        info = pltpu.get_tpu_info()
        cap = int(getattr(info, "vmem_capacity_bytes", cap))
    except Exception:
        pass
    return min(cap * 3 // 4, 100 * 1024 * 1024)


def _num_tensorcores():
    """Best-effort count of TensorCores per chip (for megacore row-sharding)."""
    n = 1
    try:
        info = pltpu.get_tpu_info()
        n = max(n, int(getattr(info, "num_cores", 1)))
    except Exception:
        pass
    try:
        n = max(n, int(getattr(jax.devices()[0], "num_cores", 1)))
    except Exception:
        pass
    return n


def _footprint(tm, th, D, x_itemsize, w_itemsize, weight_bufs=2):
    """Approximate VMEM working set for a (tm, th) tiling."""
    return (2 * tm * D * x_itemsize               # x tile (double-buffered)
            + weight_bufs * D * 2 * th * w_itemsize  # fused [W1|W2] chunk
            + weight_bufs * th * D * w_itemsize      # W3 chunk
            + 2 * tm * D * x_itemsize             # output tile
            + tm * D * 4                          # f32 accumulator scratch
            + tm * 2 * th * 4                     # gate/up intermediate (f32)
            + tm * th * w_itemsize)               # hidden cast for the W3 dot


def _pick_tiles(M, D, H, x_dtype, w_dtype, vmem_budget,
                *, tm_target=512, th_target=512, num_cores=1):
    """Pick (tm, th) so the working set fits; shrink th first, then tm."""
    xb = jnp.dtype(x_dtype).itemsize
    wb = jnp.dtype(w_dtype).itemsize

    def th_candidates():
        cands = []
        if H <= th_target:
            cands.append(H)
        t = (min(th_target, H) // 128) * 128
        while t >= 128:
            if H % t == 0 and t not in cands:
                cands.append(t)
            t -= 128
        if not cands:
            cands.append(H)
        return cands

    tm = M if M <= tm_target else tm_target
    # Keep all TensorCores busy on dual-core parts even at small M: make sure
    # the "parallel" row axis has >= num_cores blocks.
    if num_cores > 1 and pl.cdiv(M, tm) < num_cores and M > 8:
        tm = min(tm, max(8, _round_up(pl.cdiv(M, num_cores), 8)))

    cands = th_candidates()
    while True:
        for th in cands:
            if _footprint(tm, th, D, xb, wb) <= vmem_budget:
                return tm, th
        if tm <= 8:
            return tm, cands[-1]
        tm = max(8, _round_up(max(tm // 2, 8), 8))


# ---------------------------------------------------------------------------
# One-time weight preprocessing (keep OUT of the per-call hot path)
# ---------------------------------------------------------------------------
def prepare_swiglu_weights(w1, w2, w3, *, th):
    """Convert torch-layout weights into the contiguous per-chunk kernel layout.

    w1, w2: (H, D) torch (out, in);  w3: (D, H) torch (out, in).
    Returns:
      wgu: (n_h, D, 2*th) where wgu[h] = [W1_chunk^T | W2_chunk^T]
      w3c: (n_h, th, D)   where w3c[h] = W3[:, chunk]^T
    Each h-chunk is contiguous in HBM -> one linear DMA per grid step.
    """
    H, D = w1.shape
    assert H % th == 0, "hidden tile must divide H"
    n_h = H // th
    w1c = jnp.transpose(w1.reshape(n_h, th, D), (0, 2, 1))   # (n_h, D, th)
    w2c = jnp.transpose(w2.reshape(n_h, th, D), (0, 2, 1))   # (n_h, D, th)
    wgu = jnp.concatenate([w1c, w2c], axis=2)                # (n_h, D, 2*th)
    w3c = jnp.transpose(w3.reshape(D, n_h, th), (1, 2, 0))   # (n_h, th, D)
    return wgu, w3c


# ---------------------------------------------------------------------------
# Hot-path entry point (weights already prepared)
# ---------------------------------------------------------------------------
def swiglu_expert_prepared(x, wgu, w3c, *, tm=None, vmem_limit_bytes=None,
                           weight_bufs=None):
    """x: (B, T, D); wgu: (n_h, D, 2*th); w3c: (n_h, th, D)."""
    B, T, D = x.shape
    n_h, Dw, th2 = wgu.shape
    assert Dw == D
    th = th2 // 2
    assert w3c.shape == (n_h, th, D)

    M = B * T
    x2 = x.reshape(M, D)

    if vmem_limit_bytes is None:
        vmem_limit_bytes = _default_vmem_limit()

    if tm is None:
        tm, _ = _pick_tiles(M, D, n_h * th, x.dtype, wgu.dtype, vmem_limit_bytes,
                            num_cores=_num_tensorcores())
    tm = min(tm, M)

    # Ragged last row tile handled by Pallas (no wrapper pad / slice copies).
    grid = (pl.cdiv(M, tm), n_h)

    # Optionally triple-buffer the streamed weight chunks when headroom allows
    # (covers DMA jitter on the big weight transfers; skipped when VMEM-tight
    # or when the reduction is too short to benefit).
    xb = jnp.dtype(x.dtype).itemsize
    wb = jnp.dtype(wgu.dtype).itemsize
    if weight_bufs is None:
        weight_bufs = 3 if (n_h >= 3 and
                            _footprint(tm, th, D, xb, wb, 3) <= vmem_limit_bytes) else 2
    wgu_kw = {}
    w3_kw = {}
    if weight_bufs > 2:
        wgu_kw["pipeline_mode"] = pl.Buffered(weight_bufs)
        w3_kw["pipeline_mode"] = pl.Buffered(weight_bufs)

    out2 = pl.pallas_call(
        _swiglu_kernel,
        out_shape=jax.ShapeDtypeStruct((M, D), x.dtype),
        grid_spec=pltpu.PrefetchScalarGridSpec(
            num_scalar_prefetch=0,
            grid=grid,
            in_specs=[
                pl.BlockSpec((tm, D), lambda i, h: (i, 0)),                    # x rows
                pl.BlockSpec((None, D, 2 * th), lambda i, h: (h, 0, 0), **wgu_kw),  # [W1|W2] chunk
                pl.BlockSpec((None, th, D), lambda i, h: (h, 0, 0), **w3_kw),       # W3 chunk
            ],
            out_specs=pl.BlockSpec((tm, D), lambda i, h: (i, 0)),
            scratch_shapes=[pltpu.VMEM((tm, D), jnp.float32)],
        ),
        compiler_params=pltpu.CompilerParams(
            dimension_semantics=("parallel", "arbitrary"),
            vmem_limit_bytes=vmem_limit_bytes,
        ),
    )(x2, wgu, w3c)

    return out2.reshape(B, T, D)


def swiglu_expert(x, w1, w2, w3, *, activation_dtype=None):
    """Convenience wrapper taking torch-layout weights.

    NOTE: in a real model do the weight prep (prepare_swiglu_weights) once at
    load time and call swiglu_expert_prepared in the hot path.  Pass
    activation_dtype=jnp.bfloat16 to run activations in bf16 when the model
    permits (halves x/out DMA, doubles MXU throughput on v6e/v7x).
    """
    B, T, D = x.shape
    H = w1.shape[0]
    if activation_dtype is not None:
        x = x.astype(activation_dtype)
    budget = _default_vmem_limit()
    tm, th = _pick_tiles(B * T, D, H, x.dtype, w1.dtype, budget,
                         num_cores=_num_tensorcores())
    wgu, w3c = prepare_swiglu_weights(w1, w2, w3, th=th)
    return swiglu_expert_prepared(x, wgu, w3c, tm=tm, vmem_limit_bytes=budget)


# ---------------------------------------------------------------------------
# Reference + demo
# ---------------------------------------------------------------------------
def _reference(x, w1, w2, w3):
    g = jnp.einsum("btd,hd->bth", x, w1)
    u = jnp.einsum("btd,hd->bth", x, w2)
    h = g * jax.nn.sigmoid(g) * u
    return jnp.einsum("bth,dh->btd", h, w3)


if __name__ == "__main__":
    # Small shapes consistent with the module: embeddings_dims -> D,
    # hidden_dims = 2 * D, input is (batch, block_size, D).
    B, T, D = 2, 8, 32
    H = 2 * D

    key = jax.random.PRNGKey(0)
    kx, k1, k2, k3 = jax.random.split(key, 4)

    x = jax.random.normal(kx, (B, T, D), dtype=jnp.float32)
    # nn.Linear(in, out, bias=False): weight shape (out, in)
    bound1 = 1.0 / (D ** 0.5)
    bound3 = 1.0 / (H ** 0.5)
    w1 = jax.random.uniform(k1, (H, D), minval=-bound1, maxval=bound1, dtype=jnp.float32)
    w2 = jax.random.uniform(k2, (H, D), minval=-bound1, maxval=bound1, dtype=jnp.float32)
    w3 = jax.random.uniform(k3, (D, H), minval=-bound3, maxval=bound3, dtype=jnp.float32)

    # Recommended usage: one-time weight prep, then the prepared hot path.
    budget = _default_vmem_limit()
    tm, th = _pick_tiles(B * T, D, H, x.dtype, w1.dtype, budget,
                         num_cores=_num_tensorcores())
    wgu, w3c = prepare_swiglu_weights(w1, w2, w3, th=th)

    out = swiglu_expert_prepared(x, wgu, w3c, tm=tm, vmem_limit_bytes=budget)
    out = jax.block_until_ready(out)

    ref = _reference(x, w1, w2, w3)
    assert out.shape == (B, T, D)
    assert jnp.allclose(out, ref, atol=1e-4, rtol=1e-4), "mismatch vs reference"

    print("KERNEL_OK")
</pallas_src>

<mosaic_0001>
module attributes {stable_mosaic.version = 11 : i64} {
  func.func @_swiglu_kernel(%arg0: i32, %arg1: i32, %arg2: memref<16x32xf32, #tpu.memory_space<vmem>>, %arg3: memref<1x32x128xf32, #tpu.memory_space<vmem>>, %arg4: memref<1x64x32xf32, #tpu.memory_space<vmem>>, %arg5: memref<16x32xf32, #tpu.memory_space<vmem>>, %arg6: memref<16x32xf32, #tpu.memory_space<vmem>>) attributes {dimension_semantics = [#tpu.dimension_semantics<parallel>, #tpu.dimension_semantics<arbitrary>], iteration_bounds = array<i64: 1, 1>, scalar_prefetch = 0 : i64, scratch_operands = 1 : i64, tpu.core_type = #tpu.core_type<tc>, window_params = [{transform_indices = @transform_0, window_bounds = array<i64: 16, 32>}, {transform_indices = @transform_1, window_bounds = array<i64: 1, 32, 128>}, {transform_indices = @transform_2, window_bounds = array<i64: 1, 64, 32>}, {transform_indices = @transform_3, window_bounds = array<i64: 16, 32>}]} {
    %c0 = arith.constant 0 : index
    %c0_0 = arith.constant 0 : index
    %0 = vector.load %arg2[%c0, %c0_0] : memref<16x32xf32, #tpu.memory_space<vmem>>, vector<16x32xf32>
    %c0_1 = arith.constant 0 : index
    %c0_2 = arith.constant 0 : index
    %c0_3 = arith.constant 0 : index
    %1 = vector.load %arg3[%c0_1, %c0_2, %c0_3] : memref<1x32x128xf32, #tpu.memory_space<vmem>>, vector<1x32x128xf32>
    %2 = vector.shape_cast %1 : vector<1x32x128xf32> to vector<32x128xf32>
    %cst = arith.constant dense<0.000000e+00> : vector<16x128xf32>
    %3 = tpu.matmul %0, %2, %cst {dimension_numbers = #tpu.dot_dimension_numbers<[1], [0], [0], [1], [0, 0, 1, 1], [], []>} : vector<16x32xf32>, vector<32x128xf32>, vector<16x128xf32> -> vector<16x128xf32>
    %4 = vector.extract_strided_slice %3 {offsets = [0, 0], sizes = [16, 64], strides = [1, 1]} : vector<16x128xf32> to vector<16x64xf32>
    %5 = vector.extract_strided_slice %3 {offsets = [0, 64], sizes = [16, 64], strides = [1, 1]} : vector<16x128xf32> to vector<16x64xf32>
    %6 = arith.negf %4 : vector<16x64xf32>
    %7 = math.exp %6 : vector<16x64xf32>
    %cst_4 = arith.constant 1.000000e+00 : f32
    %8 = vector.broadcast %cst_4 : f32 to vector<16x64xf32>
    %9 = arith.addf %8, %7 : vector<16x64xf32>
    %10 = arith.divf %8, %9 : vector<16x64xf32>
    %11 = arith.mulf %4, %10 : vector<16x64xf32>
    %12 = arith.mulf %11, %5 : vector<16x64xf32>
    %c0_5 = arith.constant 0 : index
    %c0_6 = arith.constant 0 : index
    %c0_7 = arith.constant 0 : index
    %13 = vector.load %arg4[%c0_5, %c0_6, %c0_7] : memref<1x64x32xf32, #tpu.memory_space<vmem>>, vector<1x64x32xf32>
    %14 = vector.shape_cast %13 : vector<1x64x32xf32> to vector<64x32xf32>
    %cst_8 = arith.constant dense<0.000000e+00> : vector<16x32xf32>
    %15 = tpu.matmul %12, %14, %cst_8 {dimension_numbers = #tpu.dot_dimension_numbers<[1], [0], [0], [1], [0, 0, 1, 1], [], []>} : vector<16x64xf32>, vector<64x32xf32>, vector<16x32xf32> -> vector<16x32xf32>
    %c0_i32 = arith.constant 0 : i32
    %16 = arith.cmpi eq, %arg1, %c0_i32 : i32
    %17 = arith.extui %16 : i1 to i32
    %c0_i32_9 = arith.constant 0 : i32
    %18 = arith.cmpi ne, %17, %c0_i32_9 : i32
    scf.if %18 {
      %c0_14 = arith.constant 0 : index
      %c0_15 = arith.constant 0 : index
      %25 = vector.load %arg6[%c0_14, %c0_15] : memref<16x32xf32, #tpu.memory_space<vmem>>, vector<16x32xf32>
      tpu.vector_store %arg6[%c0_14, %c0_15], %15 {strides = array<i32>} : memref<16x32xf32, #tpu.memory_space<vmem>>, vector<16x32xf32>,
    } else {
    }
    %c0_i32_10 = arith.constant 0 : i32
    %19 = arith.cmpi sgt, %arg1, %c0_i32_10 : i32
    %20 = arith.extui %19 : i1 to i32
    %c0_i32_11 = arith.constant 0 : i32
    %21 = arith.cmpi ne, %20, %c0_i32_11 : i32
    scf.if %21 {
      %c0_14 = arith.constant 0 : index
      %c0_15 = arith.constant 0 : index
      %25 = vector.load %arg6[%c0_14, %c0_15] : memref<16x32xf32, #tpu.memory_space<vmem>>, vector<16x32xf32>
      %26 = arith.addf %25, %15 : vector<16x32xf32>
      %c0_16 = arith.constant 0 : index
      %c0_17 = arith.constant 0 : index
      %27 = vector.load %arg6[%c0_16, %c0_17] : memref<16x32xf32, #tpu.memory_space<vmem>>, vector<16x32xf32>
      tpu.vector_store %arg6[%c0_16, %c0_17], %26 {strides = array<i32>} : memref<16x32xf32, #tpu.memory_space<vmem>>, vector<16x32xf32>,
    } else {
    }
    %c0_i32_12 = arith.constant 0 : i32
    %22 = arith.cmpi eq, %arg1, %c0_i32_12 : i32
    %23 = arith.extui %22 : i1 to i32
    %c0_i32_13 = arith.constant 0 : i32
    %24 = arith.cmpi ne, %23, %c0_i32_13 : i32
    scf.if %24 {
      %c0_14 = arith.constant 0 : index
      %c0_15 = arith.constant 0 : index
      %25 = vector.load %arg6[%c0_14, %c0_15] : memref<16x32xf32, #tpu.memory_space<vmem>>, vector<16x32xf32>
      %c0_16 = arith.constant 0 : index
      %c0_17 = arith.constant 0 : index
      %26 = vector.load %arg5[%c0_16, %c0_17] : memref<16x32xf32, #tpu.memory_space<vmem>>, vector<16x32xf32>
      tpu.vector_store %arg5[%c0_16, %c0_17], %25 {strides = array<i32>} : memref<16x32xf32, #tpu.memory_space<vmem>>, vector<16x32xf32>,
    } else {
    }
    return
  }
  func.func @transform_0(%arg0: i32, %arg1: i32) -> (i32, i32) {
    %c0_i32 = arith.constant 0 : i32
    %c0_i32_0 = arith.constant 0 : i32
    return %arg0, %c0_i32 : i32, i32
  }
  func.func @transform_1(%arg0: i32, %arg1: i32) -> (i32, i32, i32) {
    %c0_i32 = arith.constant 0 : i32
    %c0_i32_0 = arith.constant 0 : i32
    %c0_i32_1 = arith.constant 0 : i32
    return %arg1, %c0_i32, %c0_i32_0 : i32, i32, i32
  }
  func.func @transform_2(%arg0: i32, %arg1: i32) -> (i32, i32, i32) {
    %c0_i32 = arith.constant 0 : i32
    %c0_i32_0 = arith.constant 0 : i32
    %c0_i32_1 = arith.constant 0 : i32
    return %arg1, %c0_i32, %c0_i32_0 : i32, i32, i32
  }
  func.func @transform_3(%arg0: i32, %arg1: i32) -> (i32, i32) {
    %c0_i32 = arith.constant 0 : i32
    %c0_i32_0 = arith.constant 0 : i32
    return %arg0, %c0_i32 : i32, i32
  }
}

</mosaic_0001>

<llo_original>
// kernel: tpu_custom_call.1
$region0: #{tpu_custom_call.1}
  #allocation0 [shape = 'u32[]', space=smem, size = 0x4, offset = 0x4, fixed_abs, tag = 'smem constant byte address 0x4 - core index']
  #allocation1 [shape = 'u32[72,128]{1,0:T(1,128)}', space=vmem, size = 0x9000, scoped, tag = 'internal scratch']
  #allocation2 [shape = 'f32[16,32]{1,0:T(8,128)}', space=vmem, size = 0x2000, scoped, tag = 'scratch operand']
  %s0 = inlined_call_operand.vmem [shape: f32[16,32], index: 0, kind: input, shape index: {}]
  %s1 = inlined_call_operand.vmem [shape: f32[1,32,128], index: 1, kind: input, shape index: {}]
  %s2 = inlined_call_operand.vmem [shape: f32[1,64,32], index: 2, kind: input, shape index: {}]
  %s3 = inlined_call_operand.hbm [shape: f32[16,32], index: 3, kind: output, shape index: {}]
  %s4 = sld [smem:[#allocation0]]
  $region34: #{tpu_custom_call.1} parent=0
    _
  %s6 = ssub.s32 1, %s4
  %s7 = scalar_select 0, %s6, %s4
  $region1: #{tpu_custom_call.1} parent=0
    #allocation3 [shape = 'u8[8192]{0}', space=vmem, size = 0x2000, scoped, tag = 'output window, operand 0, single buffered']
    #allocation4 [shape = 's32[1]{0}', space=sflag, size = 0x4, scoped, tag = 'scoped memory for tpu_custom_call.1']
    %8 = vsyncpa [#allocation4], 0
    // Predicated region
    $region2: #{tpu_custom_call.1} parent=1 // pred_check
      _
    $region3: #{tpu_custom_call.1} parent=1 // pred_check_branch
      %10 = sbr.rel (0) target = $region5
    $region4: #{tpu_custom_call.1} parent=1 // pred_region
      _
    $region5: #{tpu_custom_call.1} parent=1 // pred_fallthru
      _
    // Predicated region
    $region6: #{tpu_custom_call.1} parent=1 // pred_check
      _
    $region7: #{tpu_custom_call.1} parent=1 // pred_check_branch
      %12 = sbr.rel (0) target = $region9
    $region8: #{tpu_custom_call.1} parent=1 // pred_region
      _
    $region9: #{tpu_custom_call.1} parent=1 // pred_fallthru
      _
    // Predicated region
    $region10: #{tpu_custom_call.1} parent=1 // pred_check
      _
    $region11: #{tpu_custom_call.1} parent=1 // pred_check_branch
      %14 = sbr.rel (0) target = $region13
    $region12: #{tpu_custom_call.1} parent=1 // pred_region
      _
    $region13: #{tpu_custom_call.1} parent=1 // pred_fallthru
      _
    %v15 = vld [vmem:[%s0] sm:$0xff]
    %v16 = vld [vmem:[%s0 + $0x8] sm:$0xff]
    %v17 = vld [vmem:[%s1] sm:$0xff]
    %v18 = vld [vmem:[%s1 + $0x8] sm:$0xff]
    %v19 = vld [vmem:[%s1 + $0x10] sm:$0xff]
    %v20 = vld [vmem:[%s1 + $0x18] sm:$0xff]
    %vm21 = vcmask 261120
    %v23 = vsel %vm21, %v15, 0
    %v26 = vsel %vm21, %v16, 0
    %28 = vmatpush.msra.mxu0 0.0
    %29 = vmatpush.msra.mxu0 0.0
    %30 = vmatpush.msra.mxu0 0.0
    %31 = vmatpush.msra.mxu0 0.0
    %32 = vmatpush.msra.mxu0 0.0
    %33 = vmatpush.msra.mxu0 0.0
    %34 = vmatpush.msra.mxu0 0.0
    %35 = vmatpush.msra.mxu0 0.0
    %36 = vmatpush.msra.mxu0 0.0
    %37 = vmatpush.msra.mxu0 0.0
    %38 = vmatpush.msra.mxu0 0.0
    %39 = vmatpush.msra.mxu0 0.0
    %40 = vmatpush.msra.mxu0 %v20
    %41 = vmatpush.msra.mxu0 %v19
    %42 = vmatpush.msra.mxu0 %v18
    %43 = vmatpush.msra.mxu0 %v17
    %44 = vmatmul.f32.gmra.mxu0 %v23
    %v45 = vpop.f32.mrf.mxu0
    %v46 = vadd.f32 0.0, %v45
    %47 = vmatmul.f32.gmra.mxu0 %v26
    %v48 = vpop.f32.mrf.mxu0
    %v49 = vadd.f32 0.0, %v48
    %50 = vdwg.mxu0
    %v51 = vxor.u32 %v46, 2147483648
    %v52 = vxor.u32 %v49, 2147483648
    %v53 = vmul.f32 %v51, 1.442695
    %v54 = vpow.pop %v53
    %v55 = vmul.f32 %v52, 1.442695
    %v56 = vpow.pop %v55
    %v57 = vadd.f32 %v54, 1.0
    %v58 = vadd.f32 %v56, 1.0
    %v59 = vrcp.pop %v57
    %v60 = vmul.f32 %v57, %v59
    %v61 = vsub.f32 1.0, %v60
    %v62 = vmul.f32 %v59, %v61
    %v63 = vadd.f32 %v59, %v62
    %vm64 = vweird.f32 %v57
    %vm65 = vweird.f32 %v59
    %vm66 = vmor %vm64, %vm65
    %v67 = vsel %vm66, %v59, %v63
    %v68 = vand.u32 2147483647, %v57
    %vm69 = vcmp.eq.f32.partialorder %v68, 8.507059e+37
    %v70 = vand.u32 %v57, 2147483648
    %v71 = vor.u32 1.1754944e-38, %v70
    %v72 = vsel %vm69, %v71, %v67
    %v73 = vmul.f32 1.0, %v72
    %v74 = vrcp.pop %v58
    %v75 = vmul.f32 %v58, %v74
    %v76 = vsub.f32 1.0, %v75
    %v77 = vmul.f32 %v74, %v76
    %v78 = vadd.f32 %v74, %v77
    %vm79 = vweird.f32 %v58
    %vm80 = vweird.f32 %v74
    %vm81 = vmor %vm79, %vm80
    %v82 = vsel %vm81, %v74, %v78
    %v83 = vand.u32 2147483647, %v58
    %vm84 = vcmp.eq.f32.partialorder %v83, 8.507059e+37
    %v85 = vand.u32 %v58, 2147483648
    %v86 = vor.u32 1.1754944e-38, %v85
    %v87 = vsel %vm84, %v86, %v82
    %v88 = vmul.f32 1.0, %v87
    %v89 = vmul.f32 %v46, %v73
    %v90 = vmul.f32 %v49, %v88
    %93 = vrot.lane.b32.xlu0 %v46, 64
    %v94 = vpop.permute.xlu0 %93
    %95 = vrot.lane.b32.xlu0 %v49, 64
    %v96 = vpop.permute.xlu0 %95
    %v99 = vmul.f32 %v89, %v94
    %v100 = vmul.f32 %v90, %v96
    %v101 = vld [vmem:[%s2] sm:$0xff]
    %v102 = vld [vmem:[%s2 + $0x8] sm:$0xff]
    %v103 = vld [vmem:[%s2 + $0x10] sm:$0xff]
    %v104 = vld [vmem:[%s2 + $0x18] sm:$0xff]
    %v105 = vld [vmem:[%s2 + $0x20] sm:$0xff]
    %v106 = vld [vmem:[%s2 + $0x28] sm:$0xff]
    %v107 = vld [vmem:[%s2 + $0x30] sm:$0xff]
    %v108 = vld [vmem:[%s2 + $0x38] sm:$0xff]
    %vm109 = vcmask 523264
    %v111 = vsel %vm109, %v99, 0
    %v114 = vsel %vm109, %v100, 0
    %116 = vmatpush.msra.mxu0 0.0
    %117 = vmatpush.msra.mxu0 0.0
    %118 = vmatpush.msra.mxu0 0.0
    %119 = vmatpush.msra.mxu0 0.0
    %120 = vmatpush.msra.mxu0 0.0
    %121 = vmatpush.msra.mxu0 0.0
    %122 = vmatpush.msra.mxu0 0.0
    %123 = vmatpush.msra.mxu0 0.0
    %124 = vmatpush.msra.mxu0 %v108
    %125 = vmatpush.msra.mxu0 %v107
    %126 = vmatpush.msra.mxu0 %v106
    %127 = vmatpush.msra.mxu0 %v105
    %128 = vmatpush.msra.mxu0 %v104
    %129 = vmatpush.msra.mxu0 %v103
    %130 = vmatpush.msra.mxu0 %v102
    %131 = vmatpush.msra.mxu0 %v101
    %132 = vmatmul.f32.gmra.mxu0 %v111
    %v133 = vpop.f32.mrf.mxu0
    %v134 = vadd.f32 0.0, %v133
    %135 = vmatmul.f32.gmra.mxu0 %v114
    %v136 = vpop.f32.mrf.mxu0
    %v137 = vadd.f32 0.0, %v136
    %138 = vdwg.mxu0
    %p139 = scmp.eq.s32.totalorder 0, 0
    // Predicated region
    $region14: #{tpu_custom_call.1} parent=1 // pred_check
      %p140 = pneg %p139
    $region15: #{tpu_custom_call.1} parent=1 // pred_check_branch
      %142 = sbr.rel (%p140) target = $region17
    $region16: #{tpu_custom_call.1} parent=1 // pred_region
      %143 = vst.msk [vmem:[#allocation2] sm:$0xff] %vm21, %v134
      %144 = vst.msk [vmem:[#allocation2 + $0x8] sm:$0xff] %vm21, %v137
    $region17: #{tpu_custom_call.1} parent=1 // pred_fallthru
      _
    %p145 = scmp.gt.s32.totalorder 0, 0
    // Predicated region
    $region18: #{tpu_custom_call.1} parent=1 // pred_check
      %p146 = pneg %p145
    $region19: #{tpu_custom_call.1} parent=1 // pred_check_branch
      %148 = sbr.rel (%p146) target = $region21
    $region20: #{tpu_custom_call.1} parent=1 // pred_region
      %v149 = vld [vmem:[#allocation2] sm:$0xff]
      %v150 = vld [vmem:[#allocation2 + $0x8] sm:$0xff]
      %v151 = vadd.f32 %v149, %v134
      %v152 = vadd.f32 %v150, %v137
      %153 = vst.msk [vmem:[#allocation2] sm:$0xff] %vm21, %v151
      %154 = vst.msk [vmem:[#allocation2 + $0x8] sm:$0xff] %vm21, %v152
    $region21: #{tpu_custom_call.1} parent=1 // pred_fallthru
      _
    // Predicated region
    $region22: #{tpu_custom_call.1} parent=1 // pred_check
      %p155 = pneg %p139
    $region23: #{tpu_custom_call.1} parent=1 // pred_check_branch
      %157 = sbr.rel (%p155) target = $region25
    $region24: #{tpu_custom_call.1} parent=1 // pred_region
      %v158 = vld [vmem:[#allocation2] sm:$0xff]
      %v159 = vld [vmem:[#allocation2 + $0x8] sm:$0xff]
      %160 = vst.msk [vmem:[#allocation3] sm:$0xff] %vm21, %v158
      %161 = vst.msk [vmem:[#allocation3 + $0x8] sm:$0xff] %vm21, %v159
    $region25: #{tpu_custom_call.1} parent=1 // pred_fallthru
      _
    // Predicated region
    $region26: #{tpu_custom_call.1} parent=1 // pred_check
      _
    $region27: #{tpu_custom_call.1} parent=1 // pred_check_branch
      %163 = sbr.rel (0) target = $region29
    $region28: #{tpu_custom_call.1} parent=1 // pred_region
      %165 = vsyncadd [#allocation4], 0
      %s166 = sshll.u32 [#allocation3], 4
      %s167 = int_to_ptr.vmem [resolvable:$true] %s166
      %s168 = sshll.u32 %s3, 4
      %s169 = int_to_ptr.hbm [resolvable:$true] %s168
      %174 = dma.vmem_to_hbm [thread:$0]  %s167, 256, %s169, [#allocation4], 128, 128, 8
    $region29: #{tpu_custom_call.1} parent=1 // pred_fallthru
      _
    // Predicated region
    $region30: #{tpu_custom_call.1} parent=1 // pred_check
      _
    $region31: #{tpu_custom_call.1} parent=1 // pred_check_branch
      %176 = sbr.rel (0) target = $region33
    $region32: #{tpu_custom_call.1} parent=1 // pred_region
      %178 = dma.done [#allocation4], 256
    $region33: #{tpu_custom_call.1} parent=1 // pred_fallthru
      _
    %179 = vsyncpa [#allocation4], 1

</llo_original>
